<compile_context>
chip_gen: v7x
topology: tpu7x:2x2x1
jax: 0.10.0
libtpu: 0.0.40
codegen_flags: <defaults>
</compile_context>

<pallas_src>
import functools

import jax
import jax.numpy as jnp
from jax import lax
from jax.experimental import pallas as pl
from jax.experimental.pallas import tpu as pltpu


def _round_up(n, m):
    return (n + m - 1) // m * m


def _choose_tile(batch, in_dim, tile_b, min_grid_steps, vmem_budget_bytes):
    """Pick a batch tile: lane-dense (multiple of 128), VMEM-budgeted, >=2 steps."""
    if batch <= 128:
        return batch                      # single tile; block == full array dims
    # Per-row VMEM cost: x double-buffer is lane-padded to 128 lanes (f32), plus
    # activations / output double-buffer / headroom (~512 B/row is generous here).
    per_row = 2 * _round_up(in_dim, 128) * 4 + 512
    tb_cap = max(128, (vmem_budget_bytes // per_row) // 128 * 128)
    tb = min(tile_b, tb_cap, -(-batch // max(min_grid_steps, 1)))
    tb = max(128, _round_up(tb, 128))
    return min(tb, _round_up(batch, 128))


def _mlp_kernel(n_layers, x_ref, *refs):
    """Fused MLP forward for one batch tile, batch on the 128-lane axis.

    refs = (w0, b0, ..., w_{L-1}, b_{L-1}, o_ref)
      - w_i in PyTorch (out, in) layout, b_i as (out, 1)
      - last layer weight as (hidden, 1), bias as (1, 1) (when L >= 2)
      - hidden activations have shape (features, TB)
    """
    o_ref = refs[-1]
    p = refs[:-1]
    x = x_ref[...]                                     # (TB, D), native dtype

    if n_layers == 1:
        # Degenerate PrimeMLP(input_size, []): single Linear(D -> 1) + Sigmoid.
        w, b = p[0][...], p[1][...]                    # (1, D), (1, 1)
        z = lax.dot_general(w, x, (((1,), (1,)), ((), ())),
                            preferred_element_type=jnp.float32) + b    # (1, TB)
    else:
        # Layer 0: contract the feature axis of both operands (A @ B^T form) so the
        # result (and everything downstream) carries the batch on the lane axis.
        w0, b0 = p[0][...], p[1][...]                  # (H0, D), (H0, 1)
        h = lax.dot_general(w0, x, (((1,), (1,)), ((), ())),
                            preferred_element_type=jnp.float32)        # (H0, TB)
        h = jnp.maximum(h + b0, 0.0)

        # Remaining hidden layers: standard (out, in) @ (in, TB) MXU matmul.
        for li in range(1, n_layers - 1):
            w, b = p[2 * li][...], p[2 * li + 1][...]
            h = jnp.maximum(
                jnp.dot(w, h, preferred_element_type=jnp.float32) + b, 0.0)

        # Final (hidden -> 1) layer: a 1-row MXU matmul wastes the array, so run it
        # on the VPU (broadcast-mul) + XLU (sublane reduce).
        w_last, b_last = p[-2][...], p[-1][...]        # (H, 1), (1, 1)
        z = jnp.sum(h * w_last, axis=0, keepdims=True) + b_last        # (1, TB)

    # Exact sigmoid; the divide acts on a (1, TB) tensor -> negligible VALU cost.
    out = 1.0 / (1.0 + jnp.exp(-z))
    o_ref[...] = out.astype(o_ref.dtype).reshape(o_ref.shape)          # (1, 1, TB)


def init_prime_mlp_params(key, input_size, hidden_layers):
    """Parameters mirroring nn.Linear defaults: W (out, in), b (out,)."""
    sizes = [input_size] + list(hidden_layers) + [1]
    params = []
    for i in range(len(sizes) - 1):
        fan_in, fan_out = sizes[i], sizes[i + 1]
        key, kw, kb = jax.random.split(key, 3)
        bound = 1.0 / (fan_in ** 0.5)
        w = jax.random.uniform(kw, (fan_out, fan_in), jnp.float32, -bound, bound)
        b = jax.random.uniform(kb, (fan_out,), jnp.float32, -bound, bound)
        params.append((w, b))
    return params


def prime_mlp_forward(x, params, *, tile_b=8192, min_grid_steps=2):
    """Fused Pallas MLP forward.  x: (B, input_size) -> (B, 1) float32.

    params: list of (W (out, in), b (out,)) in PyTorch nn.Linear layout.
    """
    n_layers = len(params)
    assert n_layers >= 1
    B, D = x.shape

    # Keep the tile within ~32 MiB of VMEM (fits v7x's 64 MiB physical VMEM with
    # headroom); the compiler limit below is raised above the scoped defaults.
    TB = _choose_tile(B, D, tile_b, min_grid_steps, vmem_budget_bytes=32 * 1024 * 1024)
    G = pl.cdiv(B, TB)

    # Weights/biases: tiny, reshaped on the host (negligible), VMEM-resident in-kernel.
    flat_inputs = [x]
    for li, (w, b) in enumerate(params):
        w = jnp.asarray(w, jnp.float32)
        b = jnp.asarray(b, jnp.float32)
        if li == n_layers - 1 and n_layers > 1:
            flat_inputs.append(w.reshape(-1, 1))       # (hidden, 1) column for VPU path
            flat_inputs.append(b.reshape(1, 1))
        else:
            flat_inputs.append(w)                      # (out, in)
            flat_inputs.append(b.reshape(-1, 1))       # (out, 1): broadcasts over lanes

    in_specs = [pl.BlockSpec((TB, D), lambda i: (i, 0))]
    in_specs += [pl.BlockSpec(a.shape, lambda i: (0, 0)) for a in flat_inputs[1:]]

    out_shape = jax.ShapeDtypeStruct((G, 1, TB), jnp.float32)
    out_specs = pl.BlockSpec((1, 1, TB), lambda i: (i, 0, 0))

    kernel = functools.partial(_mlp_kernel, n_layers)
    out = pl.pallas_call(
        kernel,
        out_shape=out_shape,
        grid=(G,),
        in_specs=in_specs,
        out_specs=out_specs,
        compiler_params=pltpu.CompilerParams(
            dimension_semantics=("parallel",),          # batch tiles independent (v7x: 2 TCs)
            vmem_limit_bytes=48 * 1024 * 1024,          # above 16/32 MiB scoped defaults,
        ),                                              # below v7x 64 MiB physical
    )(*flat_inputs)

    # (G, 1, TB) -> (G*TB, 1); drop the padded rows of the ragged last tile.
    return out.reshape(G * TB, 1)[:B]


def _reference_forward(x, params):
    h = x
    for i, (w, b) in enumerate(params):
        z = h @ w.T + b
        h = jnp.maximum(z, 0.0) if i < len(params) - 1 else jax.nn.sigmoid(z)
    return h


if __name__ == "__main__":
    # Binary-encoded integers -> prime/not-prime probability.
    batch = 200              # not a multiple of the tile -> exercises the ragged last tile
    input_size = 16          # 16-bit binary representation
    hidden_layers = [32, 32]

    key = jax.random.PRNGKey(0)
    key, kx = jax.random.split(key)
    x = (jax.random.uniform(kx, (batch, input_size)) > 0.5).astype(jnp.float32)

    params = init_prime_mlp_params(key, input_size, hidden_layers)

    out = prime_mlp_forward(x, params)   # tile chooser -> TB=128, 2 pipelined grid steps
    out = jax.block_until_ready(out)

    ref = _reference_forward(x, params)
    assert out.shape == (batch, 1), out.shape
    assert bool(jnp.all(jnp.isfinite(out))), "non-finite output"
    assert jnp.allclose(out, ref, atol=2e-3, rtol=0.0), (out, ref)

    print("KERNEL_OK")
</pallas_src>

<mosaic_0001>
module attributes {stable_mosaic.version = 11 : i64} {
  func.func @_mlp_kernel(%arg0: i32, %arg1: memref<128x16xf32, #tpu.memory_space<vmem>>, %arg2: memref<32x16xf32, #tpu.memory_space<vmem>>, %arg3: memref<32x1xf32, #tpu.memory_space<vmem>>, %arg4: memref<32x32xf32, #tpu.memory_space<vmem>>, %arg5: memref<32x1xf32, #tpu.memory_space<vmem>>, %arg6: memref<32x1xf32, #tpu.memory_space<vmem>>, %arg7: memref<1x1xf32, #tpu.memory_space<vmem>>, %arg8: memref<1x1x128xf32, #tpu.memory_space<vmem>>) attributes {dimension_semantics = [#tpu.dimension_semantics<parallel>], iteration_bounds = array<i64: 2>, scalar_prefetch = 0 : i64, scratch_operands = 0 : i64, tpu.core_type = #tpu.core_type<tc>, window_params = [{transform_indices = @transform_0, window_bounds = array<i64: 128, 16>}, {pipeline_mode = #tpu.pipeline_mode<synchronous>, transform_indices = @transform_1, window_bounds = array<i64: 32, 16>}, {pipeline_mode = #tpu.pipeline_mode<synchronous>, transform_indices = @transform_2, window_bounds = array<i64: 32, 1>}, {pipeline_mode = #tpu.pipeline_mode<synchronous>, transform_indices = @transform_3, window_bounds = array<i64: 32, 32>}, {pipeline_mode = #tpu.pipeline_mode<synchronous>, transform_indices = @transform_4, window_bounds = array<i64: 32, 1>}, {pipeline_mode = #tpu.pipeline_mode<synchronous>, transform_indices = @transform_5, window_bounds = array<i64: 32, 1>}, {pipeline_mode = #tpu.pipeline_mode<synchronous>, transform_indices = @transform_6, window_bounds = array<i64: 1, 1>}, {transform_indices = @transform_7, window_bounds = array<i64: 1, 1, 128>}]} {
    %c0 = arith.constant 0 : index
    %c0_0 = arith.constant 0 : index
    %0 = vector.load %arg1[%c0, %c0_0] : memref<128x16xf32, #tpu.memory_space<vmem>>, vector<128x16xf32>
    %c0_1 = arith.constant 0 : index
    %c0_2 = arith.constant 0 : index
    %1 = vector.load %arg2[%c0_1, %c0_2] : memref<32x16xf32, #tpu.memory_space<vmem>>, vector<32x16xf32>
    %c0_3 = arith.constant 0 : index
    %c0_4 = arith.constant 0 : index
    %2 = vector.load %arg3[%c0_3, %c0_4] : memref<32x1xf32, #tpu.memory_space<vmem>>, vector<32x1xf32>
    %cst = arith.constant dense<0.000000e+00> : vector<32x128xf32>
    %3 = tpu.matmul %1, %0, %cst {dimension_numbers = #tpu.dot_dimension_numbers<[1], [1], [0], [0], [0, 0, 1, 0], [], []>} : vector<32x16xf32>, vector<128x16xf32>, vector<32x128xf32> -> vector<32x128xf32>
    %4 = vector.broadcast %2 : vector<32x1xf32> to vector<32x128xf32>
    %5 = arith.addf %3, %4 : vector<32x128xf32>
    %cst_5 = arith.constant 0.000000e+00 : f32
    %6 = vector.broadcast %cst_5 : f32 to vector<32x128xf32>
    %7 = arith.maximumf %5, %6 : vector<32x128xf32>
    %c0_6 = arith.constant 0 : index
    %c0_7 = arith.constant 0 : index
    %8 = vector.load %arg4[%c0_6, %c0_7] : memref<32x32xf32, #tpu.memory_space<vmem>>, vector<32x32xf32>
    %c0_8 = arith.constant 0 : index
    %c0_9 = arith.constant 0 : index
    %9 = vector.load %arg5[%c0_8, %c0_9] : memref<32x1xf32, #tpu.memory_space<vmem>>, vector<32x1xf32>
    %cst_10 = arith.constant dense<0.000000e+00> : vector<32x128xf32>
    %10 = tpu.matmul %8, %7, %cst_10 {dimension_numbers = #tpu.dot_dimension_numbers<[1], [0], [0], [1], [0, 0, 1, 1], [], []>} : vector<32x32xf32>, vector<32x128xf32>, vector<32x128xf32> -> vector<32x128xf32>
    %11 = vector.broadcast %9 : vector<32x1xf32> to vector<32x128xf32>
    %12 = arith.addf %10, %11 : vector<32x128xf32>
    %cst_11 = arith.constant 0.000000e+00 : f32
    %13 = vector.broadcast %cst_11 : f32 to vector<32x128xf32>
    %14 = arith.maximumf %12, %13 : vector<32x128xf32>
    %c0_12 = arith.constant 0 : index
    %c0_13 = arith.constant 0 : index
    %15 = vector.load %arg6[%c0_12, %c0_13] : memref<32x1xf32, #tpu.memory_space<vmem>>, vector<32x1xf32>
    %c0_14 = arith.constant 0 : index
    %c0_15 = arith.constant 0 : index
    %16 = vector.load %arg7[%c0_14, %c0_15] : memref<1x1xf32, #tpu.memory_space<vmem>>, vector<1x1xf32>
    %17 = vector.broadcast %15 : vector<32x1xf32> to vector<32x128xf32>
    %18 = arith.mulf %14, %17 : vector<32x128xf32>
    %cst_16 = arith.constant dense<0.000000e+00> : vector<128xf32>
    %19 = vector.multi_reduction <add>, %18, %cst_16 [0] : vector<32x128xf32> to vector<128xf32>
    %20 = vector.shape_cast %19 : vector<128xf32> to vector<1x128xf32>
    %21 = vector.broadcast %16 : vector<1x1xf32> to vector<1x128xf32>
    %22 = arith.addf %20, %21 : vector<1x128xf32>
    %cst_17 = arith.constant 0.000000e+00 : f32
    %23 = vector.broadcast %cst_17 : f32 to vector<1x128xf32>
    %24 = arith.subf %23, %22 : vector<1x128xf32>
    %25 = math.exp %24 : vector<1x128xf32>
    %cst_18 = arith.constant 1.000000e+00 : f32
    %26 = vector.broadcast %cst_18 : f32 to vector<1x128xf32>
    %27 = arith.addf %26, %25 : vector<1x128xf32>
    %cst_19 = arith.constant 1.000000e+00 : f32
    %28 = vector.broadcast %cst_19 : f32 to vector<1x128xf32>
    %29 = arith.divf %28, %27 : vector<1x128xf32>
    %30 = vector.shape_cast %29 : vector<1x128xf32> to vector<1x1x128xf32>
    %c0_20 = arith.constant 0 : index
    %c0_21 = arith.constant 0 : index
    %c0_22 = arith.constant 0 : index
    %31 = vector.load %arg8[%c0_20, %c0_21, %c0_22] : memref<1x1x128xf32, #tpu.memory_space<vmem>>, vector<1x1x128xf32>
    tpu.vector_store %arg8[%c0_20, %c0_21, %c0_22], %30 {strides = array<i32>} : memref<1x1x128xf32, #tpu.memory_space<vmem>>, vector<1x1x128xf32>,
    return
  }
  func.func @transform_0(%arg0: i32) -> (i32, i32) {
    %c0_i32 = arith.constant 0 : i32
    %c0_i32_0 = arith.constant 0 : i32
    return %arg0, %c0_i32 : i32, i32
  }
  func.func @transform_1(%arg0: i32) -> (i32, i32) {
    %c0_i32 = arith.constant 0 : i32
    %c0_i32_0 = arith.constant 0 : i32
    %c0_i32_1 = arith.constant 0 : i32
    return %c0_i32, %c0_i32_0 : i32, i32
  }
  func.func @transform_2(%arg0: i32) -> (i32, i32) {
    %c0_i32 = arith.constant 0 : i32
    %c0_i32_0 = arith.constant 0 : i32
    %c0_i32_1 = arith.constant 0 : i32
    return %c0_i32, %c0_i32_0 : i32, i32
  }
  func.func @transform_3(%arg0: i32) -> (i32, i32) {
    %c0_i32 = arith.constant 0 : i32
    %c0_i32_0 = arith.constant 0 : i32
    %c0_i32_1 = arith.constant 0 : i32
    return %c0_i32, %c0_i32_0 : i32, i32
  }
  func.func @transform_4(%arg0: i32) -> (i32, i32) {
    %c0_i32 = arith.constant 0 : i32
    %c0_i32_0 = arith.constant 0 : i32
    %c0_i32_1 = arith.constant 0 : i32
    return %c0_i32, %c0_i32_0 : i32, i32
  }
  func.func @transform_5(%arg0: i32) -> (i32, i32) {
    %c0_i32 = arith.constant 0 : i32
    %c0_i32_0 = arith.constant 0 : i32
    %c0_i32_1 = arith.constant 0 : i32
    return %c0_i32, %c0_i32_0 : i32, i32
  }
  func.func @transform_6(%arg0: i32) -> (i32, i32) {
    %c0_i32 = arith.constant 0 : i32
    %c0_i32_0 = arith.constant 0 : i32
    %c0_i32_1 = arith.constant 0 : i32
    return %c0_i32, %c0_i32_0 : i32, i32
  }
  func.func @transform_7(%arg0: i32) -> (i32, i32, i32) {
    %c0_i32 = arith.constant 0 : i32
    %c0_i32_0 = arith.constant 0 : i32
    %c0_i32_1 = arith.constant 0 : i32
    return %arg0, %c0_i32, %c0_i32_0 : i32, i32, i32
  }
}

</mosaic_0001>

<llo_original>
// kernel: tpu_custom_call.1
$region0: #{tpu_custom_call.1}
  #allocation0 [shape = 'u32[]', space=smem, size = 0x4, offset = 0x4, fixed_abs, tag = 'smem constant byte address 0x4 - core index']
  #allocation1 [shape = 'u32[144,128]{1,0:T(1,128)}', space=vmem, size = 0x12000, scoped, tag = 'internal scratch']
  #allocation2 [shape = 'f32[1,1]{1,0:T(1,128)S(1)}', space=vmem, size = 0x200, scoped, tag = 'scoped memory for tpu_custom_call.1']
  %s0 = inlined_call_operand.vmem [shape: f32[200,16], index: 0, kind: input, shape index: {}]
  %s1 = inlined_call_operand.vmem [shape: f32[32,16], index: 1, kind: input, shape index: {}]
  %s2 = inlined_call_operand.vmem [shape: f32[32,1], index: 2, kind: input, shape index: {}]
  %s3 = inlined_call_operand.vmem [shape: f32[32,32], index: 3, kind: input, shape index: {}]
  %s4 = inlined_call_operand.vmem [shape: f32[32,1], index: 4, kind: input, shape index: {}]
  %s5 = inlined_call_operand.vmem [shape: f32[32,1], index: 5, kind: input, shape index: {}]
  %s6 = inlined_call_operand.<no memory space> [shape: f32[1,1], index: 6, kind: input, shape index: {}]
  %s7 = inlined_call_operand.hbm [shape: f32[2,1,128], index: 7, kind: output, shape index: {}]
  %s8 = sld [smem:[#allocation0]]
  $region61: #{tpu_custom_call.1} parent=0
    _
  %s10 = ssub.s32 1, %s8
  %s11 = scalar_select 0, %s10, %s8
  %v12 = vstv %s6
  %13 = vst [vmem:[#allocation2] sm:$0x1] %v12
  $region1: #{tpu_custom_call.1} parent=0
    #allocation3 [shape = 'u8[1024]{0}', space=vmem, size = 0x400, scoped, tag = 'output window, operand 0']
    #allocation4 [shape = 's32[2]{0}', space=sflag, size = 0x8, scoped, tag = 'scoped memory for tpu_custom_call.1']
    %14 = vsyncpa [#allocation4], 0
    %s15 = scalar_lea.sflag [#allocation4], 1
    %16 = vsyncpa %s15, 0
    loop: start=0, step=1, limit=4
    $region2: #{tpu_custom_call.1} parent=1 // loop_pre_header
      _
    $region3: #{tpu_custom_call.1} parent=1 // loop_header
      %s18 = sphi 0, %s22
      %p19 = scmp.ge.s32.totalorder %s18, 4
      %s28 = sphi 0, %s30
      %s31 = sphi 0, %s28
      %s32 = sphi 0, %s31
      %s48 = sphi 0, %s32
      %s52 = sphi 0, %s52
      %s54 = sphi 0, %s52
      %s55 = sphi 0, %s54
      %s69 = sphi 0, %s55
      %s73 = sphi 0, %s73
      %s75 = sphi 0, %s73
      %s76 = sphi 0, %s75
      %s90 = sphi 0, %s76
      %s94 = sphi 0, %s94
      %s96 = sphi 0, %s94
      %s97 = sphi 0, %s96
      %s111 = sphi 0, %s97
      %s115 = sphi 0, %s115
      %s117 = sphi 0, %s115
      %s118 = sphi 0, %s117
      %s132 = sphi 0, %s118
      %s136 = sphi 0, %s136
      %s138 = sphi 0, %s136
      %s139 = sphi 0, %s138
      %s153 = sphi 0, %s139
      %s157 = sphi 0, %s157
      %s159 = sphi 0, %s157
      %s160 = sphi 0, %s159
      %s174 = sphi 0, %s160
      %s180 = sphi 0, %s182
      %s183 = sphi 0, %s180
      %s184 = sphi 0, %s183
      %s200 = sphi 0, %s184
    $region4: #{tpu_custom_call.1} parent=1 // loop_header_branch
      %21 = sbr.rel (%p19) target = $region8
    $region5: #{tpu_custom_call.1} parent=1 // loop_body
      %s23 = ssub.s32 %s18, 1
      %s24 = ssub.s32 %s18, 2
      %s25 = sadd.s32 %s18, 1
      %s26 = ssub.s32 %s18, %s25
      %p27 = scmp.eq.s32.totalorder %s26, 0
      %s29 = sadd.s32 %s28, 1
      %s30 = scalar_select %p27, %s28, %s29
      %p33 = pneg %p27
      %p34 = scmp.eq.s32.totalorder %s18, 1
      %p35 = por %p33, %p34
      %p36 = scmp.ne.s32.totalorder %s28, %s31
      %p37 = scmp.eq.s32.totalorder %s18, 0
      %p38 = por %p36, %p37
      %p39 = scmp.ne.s32.totalorder %s28, %s31
      %p40 = scmp.eq.s32.totalorder %s23, 1
      %p41 = por %p39, %p40
      %p42 = scmp.ne.s32.totalorder %s31, %s32
      %p43 = scmp.eq.s32.totalorder %s23, 0
      %p44 = por %p42, %p43
      %p45 = scmp.ne.s32.totalorder %s31, %s32
      %p46 = scmp.eq.s32.totalorder %s24, 1
      %p47 = por %p45, %p46
      %p49 = scmp.ne.s32.totalorder %s32, %s48
      %p50 = scmp.eq.s32.totalorder %s24, 0
      %p51 = por %p49, %p50
      %s53 = sadd.s32 %s52, 1
      %p56 = scmp.eq.s32.totalorder %s18, 1
      %p57 = scmp.ne.s32.totalorder %s52, %s54
      %p58 = scmp.eq.s32.totalorder %s18, 0
      %p59 = por %p57, %p58
      %p60 = scmp.ne.s32.totalorder %s52, %s54
      %p61 = scmp.eq.s32.totalorder %s23, 1
      %p62 = por %p60, %p61
      %p63 = scmp.ne.s32.totalorder %s54, %s55
      %p64 = scmp.eq.s32.totalorder %s23, 0
      %p65 = por %p63, %p64
      %p66 = scmp.ne.s32.totalorder %s54, %s55
      %p67 = scmp.eq.s32.totalorder %s24, 1
      %p68 = por %p66, %p67
      %p70 = scmp.ne.s32.totalorder %s55, %s69
      %p71 = scmp.eq.s32.totalorder %s24, 0
      %p72 = por %p70, %p71
      %s74 = sadd.s32 %s73, 1
      %p77 = scmp.eq.s32.totalorder %s18, 1
      %p78 = scmp.ne.s32.totalorder %s73, %s75
      %p79 = scmp.eq.s32.totalorder %s18, 0
      %p80 = por %p78, %p79
      %p81 = scmp.ne.s32.totalorder %s73, %s75
      %p82 = scmp.eq.s32.totalorder %s23, 1
      %p83 = por %p81, %p82
      %p84 = scmp.ne.s32.totalorder %s75, %s76
      %p85 = scmp.eq.s32.totalorder %s23, 0
      %p86 = por %p84, %p85
      %p87 = scmp.ne.s32.totalorder %s75, %s76
      %p88 = scmp.eq.s32.totalorder %s24, 1
      %p89 = por %p87, %p88
      %p91 = scmp.ne.s32.totalorder %s76, %s90
      %p92 = scmp.eq.s32.totalorder %s24, 0
      %p93 = por %p91, %p92
      %s95 = sadd.s32 %s94, 1
      %p98 = scmp.eq.s32.totalorder %s18, 1
      %p99 = scmp.ne.s32.totalorder %s94, %s96
      %p100 = scmp.eq.s32.totalorder %s18, 0
      %p101 = por %p99, %p100
      %p102 = scmp.ne.s32.totalorder %s94, %s96
      %p103 = scmp.eq.s32.totalorder %s23, 1
      %p104 = por %p102, %p103
      %p105 = scmp.ne.s32.totalorder %s96, %s97
      %p106 = scmp.eq.s32.totalorder %s23, 0
      %p107 = por %p105, %p106
      %p108 = scmp.ne.s32.totalorder %s96, %s97
      %p109 = scmp.eq.s32.totalorder %s24, 1
      %p110 = por %p108, %p109
      %p112 = scmp.ne.s32.totalorder %s97, %s111
      %p113 = scmp.eq.s32.totalorder %s24, 0
      %p114 = por %p112, %p113
      %s116 = sadd.s32 %s115, 1
      %p119 = scmp.eq.s32.totalorder %s18, 1
      %p120 = scmp.ne.s32.totalorder %s115, %s117
      %p121 = scmp.eq.s32.totalorder %s18, 0
      %p122 = por %p120, %p121
      %p123 = scmp.ne.s32.totalorder %s115, %s117
      %p124 = scmp.eq.s32.totalorder %s23, 1
      %p125 = por %p123, %p124
      %p126 = scmp.ne.s32.totalorder %s117, %s118
      %p127 = scmp.eq.s32.totalorder %s23, 0
      %p128 = por %p126, %p127
      %p129 = scmp.ne.s32.totalorder %s117, %s118
      %p130 = scmp.eq.s32.totalorder %s24, 1
      %p131 = por %p129, %p130
      %p133 = scmp.ne.s32.totalorder %s118, %s132
      %p134 = scmp.eq.s32.totalorder %s24, 0
      %p135 = por %p133, %p134
      %s137 = sadd.s32 %s136, 1
      %p140 = scmp.eq.s32.totalorder %s18, 1
      %p141 = scmp.ne.s32.totalorder %s136, %s138
      %p142 = scmp.eq.s32.totalorder %s18, 0
      %p143 = por %p141, %p142
      %p144 = scmp.ne.s32.totalorder %s136, %s138
      %p145 = scmp.eq.s32.totalorder %s23, 1
      %p146 = por %p144, %p145
      %p147 = scmp.ne.s32.totalorder %s138, %s139
      %p148 = scmp.eq.s32.totalorder %s23, 0
      %p149 = por %p147, %p148
      %p150 = scmp.ne.s32.totalorder %s138, %s139
      %p151 = scmp.eq.s32.totalorder %s24, 1
      %p152 = por %p150, %p151
      %p154 = scmp.ne.s32.totalorder %s139, %s153
      %p155 = scmp.eq.s32.totalorder %s24, 0
      %p156 = por %p154, %p155
      %s158 = sadd.s32 %s157, 1
      %p161 = scmp.eq.s32.totalorder %s18, 1
      %p162 = scmp.ne.s32.totalorder %s157, %s159
      %p163 = scmp.eq.s32.totalorder %s18, 0
      %p164 = por %p162, %p163
      %p165 = scmp.ne.s32.totalorder %s157, %s159
      %p166 = scmp.eq.s32.totalorder %s23, 1
      %p167 = por %p165, %p166
      %p168 = scmp.ne.s32.totalorder %s159, %s160
      %p169 = scmp.eq.s32.totalorder %s23, 0
      %p170 = por %p168, %p169
      %p171 = scmp.ne.s32.totalorder %s159, %s160
      %p172 = scmp.eq.s32.totalorder %s24, 1
      %p173 = por %p171, %p172
      %p175 = scmp.ne.s32.totalorder %s160, %s174
      %p176 = scmp.eq.s32.totalorder %s24, 0
      %p177 = por %p175, %p176
      %s178 = ssub.s32 %s18, %s25
      %p179 = scmp.eq.s32.totalorder %s178, 0
      %s181 = sadd.s32 %s180, 1
      %s182 = scalar_select %p179, %s180, %s181
      %p185 = pneg %p179
      %p186 = scmp.eq.s32.totalorder %s18, 1
      %p187 = por %p185, %p186
      %p188 = scmp.ne.s32.totalorder %s180, %s183
      %p189 = scmp.eq.s32.totalorder %s18, 0
      %p190 = por %p188, %p189
      %p191 = scmp.ne.s32.totalorder %s180, %s183
      %p192 = scmp.eq.s32.totalorder %s23, 1
      %p193 = por %p191, %p192
      %p194 = scmp.ne.s32.totalorder %s183, %s184
      %p195 = scmp.eq.s32.totalorder %s23, 0
      %p196 = por %p194, %p195
      %p197 = scmp.ne.s32.totalorder %s183, %s184
      %p198 = scmp.eq.s32.totalorder %s24, 1
      %p199 = por %p197, %p198
      %p201 = scmp.ne.s32.totalorder %s184, %s200
      %p202 = scmp.eq.s32.totalorder %s24, 0
      %p203 = por %p201, %p202
      %p204 = scmp.le.s32.totalorder 1, %s18
      %p205 = scmp.lt.s32.totalorder %s18, 3
      %p206 = pnand %p204, %p205
      %p207 = pneg %p206
      // Predicated region
      $region9: #{tpu_custom_call.1} parent=5 // pred_check
        _
      $region10: #{tpu_custom_call.1} parent=5 // pred_check_branch
        %209 = sbr.rel (%p206) target = $region12
      $region11: #{tpu_custom_call.1} parent=5 // pred_region
        %s210 = ssub.s32 %s18, 1
        // Predicated region
        $region13: #{tpu_custom_call.1} parent=11 // pred_check
          %p211 = pneg %p65
        $region14: #{tpu_custom_call.1} parent=11 // pred_check_branch
          %213 = sbr.rel (%p211) target = $region16
        $region15: #{tpu_custom_call.1} parent=11 // pred_region
          _
        $region16: #{tpu_custom_call.1} parent=11 // pred_fallthru
          _
        // Predicated region
        $region17: #{tpu_custom_call.1} parent=11 // pred_check
          %p214 = pneg %p86
        $region18: #{tpu_custom_call.1} parent=11 // pred_check_branch
          %216 = sbr.rel (%p214) target = $region20
        $region19: #{tpu_custom_call.1} parent=11 // pred_region
          _
        $region20: #{tpu_custom_call.1} parent=11 // pred_fallthru
          _
        // Predicated region
        $region21: #{tpu_custom_call.1} parent=11 // pred_check
          %p217 = pneg %p107
        $region22: #{tpu_custom_call.1} parent=11 // pred_check_branch
          %219 = sbr.rel (%p217) target = $region24
        $region23: #{tpu_custom_call.1} parent=11 // pred_region
          _
        $region24: #{tpu_custom_call.1} parent=11 // pred_fallthru
          _
        // Predicated region
        $region25: #{tpu_custom_call.1} parent=11 // pred_check
          %p220 = pneg %p128
        $region26: #{tpu_custom_call.1} parent=11 // pred_check_branch
          %222 = sbr.rel (%p220) target = $region28
        $region27: #{tpu_custom_call.1} parent=11 // pred_region
          _
        $region28: #{tpu_custom_call.1} parent=11 // pred_fallthru
          _
        // Predicated region
        $region29: #{tpu_custom_call.1} parent=11 // pred_check
          %p223 = pneg %p149
        $region30: #{tpu_custom_call.1} parent=11 // pred_check_branch
          %225 = sbr.rel (%p223) target = $region32
        $region31: #{tpu_custom_call.1} parent=11 // pred_region
          _
        $region32: #{tpu_custom_call.1} parent=11 // pred_fallthru
          _
        // Predicated region
        $region33: #{tpu_custom_call.1} parent=11 // pred_check
          %p226 = pneg %p170
        $region34: #{tpu_custom_call.1} parent=11 // pred_check_branch
          %228 = sbr.rel (%p226) target = $region36
        $region35: #{tpu_custom_call.1} parent=11 // pred_region
          _
        $region36: #{tpu_custom_call.1} parent=11 // pred_fallthru
          _
      $region12: #{tpu_custom_call.1} parent=5 // pred_fallthru
        _
      %p229 = scmp.lt.s32.totalorder %s18, 2
      // Predicated region
      $region37: #{tpu_custom_call.1} parent=5 // pred_check
        %p230 = pneg %p229
      $region38: #{tpu_custom_call.1} parent=5 // pred_check_branch
        %232 = sbr.rel (%p230) target = $region40
      $region39: #{tpu_custom_call.1} parent=5 // pred_region
        // Predicated region
        $region41: #{tpu_custom_call.1} parent=39 // pred_check
          %p233 = pneg %p38
        $region42: #{tpu_custom_call.1} parent=39 // pred_check_branch
          %235 = sbr.rel (%p233) target = $region44
        $region43: #{tpu_custom_call.1} parent=39 // pred_region
          %s236 = smul.u32 16, %s18
          %s237 = ssub.s32 25, %s236
          %p238 = scmp.lt.s32.totalorder %s237, 16
          %s239 = scalar_select %p238, %s237, 16
          %s240 = smul.u32 128, %s239
          %p241 = scmp.lt.s32.totalorder %s236, 24
          %s242 = scalar_select %p241, %s236, 24
          %s243 = smul.addr %s242, 8
          %s244 = scalar_lea.vmem %s0, %s243
          %s245 = smul.u32 16, %s18
          %s246 = ssub.s32 25, %s245
          %p247 = scmp.lt.s32.totalorder %s246, 16
          %s248 = scalar_select %p247, %s246, 16
          %s249 = smul.u32 128, %s248
        $region44: #{tpu_custom_call.1} parent=39 // pred_fallthru
          _
      $region40: #{tpu_custom_call.1} parent=5 // pred_fallthru
        _
      %p250 = scmp.le.s32.totalorder 1, %s18
      %p251 = scmp.lt.s32.totalorder %s18, 3
      %p252 = pnand %p250, %p251
      %p253 = pneg %p252
      // Predicated region
      $region45: #{tpu_custom_call.1} parent=5 // pred_check
        _
      $region46: #{tpu_custom_call.1} parent=5 // pred_check_branch
        %255 = sbr.rel (%p252) target = $region48
      $region47: #{tpu_custom_call.1} parent=5 // pred_region
        %s256 = ssub.s32 %s18, 1
        %s257 = smul.u32 16, %s23
        %s258 = ssub.s32 25, %s257
        %p259 = scmp.lt.s32.totalorder %s258, 16
        %s260 = scalar_select %p259, %s258, 16
        %s261 = smul.u32 128, %s260
        %p262 = scmp.lt.s32.totalorder %s257, 24
        %s263 = scalar_select %p262, %s257, 24
        %s264 = smul.addr %s263, 8
        %s265 = scalar_lea.vmem %s0, %s264
        %p266 = pneg %p44
        %p267 = pneg %p41
        %p268 = pneg %p65
        %p269 = pneg %p62
        %p270 = pneg %p86
        %p271 = pneg %p83
        %p272 = pneg %p107
        %p273 = pneg %p104
        %p274 = pneg %p128
        %p275 = pneg %p125
        %p276 = pneg %p149
        %p277 = pneg %p146
        %p278 = pneg %p170
        %p279 = pneg %p167
        %p280 = pneg %p196
        %p281 = pneg %p193
        %s282 = sand.u32 %s183, 1
        %s283 = scalar_lea.sflag [#allocation4], %s282
        %s284 = sand.u32 %s183, 1
        %s285 = scalar_lea.vmem [#allocation3], %s284
        %s286 = smul.u32 16, %s23
        %s287 = ssub.s32 25, %s286
        %p288 = scmp.lt.s32.totalorder %s287, 16
        %s289 = scalar_select %p288, %s287, 16
        %s290 = smul.u32 128, %s289
        %p291 = scmp.lt.s32.totalorder %s286, 24
        %s292 = scalar_select %p291, %s286, 24
        %s293 = smul.addr %s292, 8
        %s294 = scalar_lea.vmem %s0, %s293
        %s295 = smul.u32 16, %s23
        %s296 = ssub.s32 25, %s295
        %p297 = scmp.lt.s32.totalorder %s296, 16
        %s298 = scalar_select %p297, %s296, 16
        %s299 = smul.u32 128, %s298
        %v300 = vld [vmem:[%s294] sm:$0xff]
        %v301 = vld [vmem:[%s294 + $0x8] sm:$0xff]
        %v302 = vld [vmem:[%s294 + $0x10] sm:$0xff]
        %v303 = vld [vmem:[%s294 + $0x18] sm:$0xff]
        %v304 = vld [vmem:[%s294 + $0x20] sm:$0xff]
        %v305 = vld [vmem:[%s294 + $0x28] sm:$0xff]
        %v306 = vld [vmem:[%s294 + $0x30] sm:$0xff]
        %v307 = vld [vmem:[%s294 + $0x38] sm:$0xff]
        %v308 = vld [vmem:[%s294 + $0x40] sm:$0xff]
        %v309 = vld [vmem:[%s294 + $0x48] sm:$0xff]
        %v310 = vld [vmem:[%s294 + $0x50] sm:$0xff]
        %v311 = vld [vmem:[%s294 + $0x58] sm:$0xff]
        %v312 = vld [vmem:[%s294 + $0x60] sm:$0xff]
        %v313 = vld [vmem:[%s294 + $0x68] sm:$0xff]
        %v314 = vld [vmem:[%s294 + $0x70] sm:$0xff]
        %v315 = vld [vmem:[%s294 + $0x78] sm:$0xff]
        %v316 = vld [vmem:[%s1] sm:$0xff]
        %v317 = vld [vmem:[%s1 + $0x8] sm:$0xff]
        %v318 = vld [vmem:[%s1 + $0x10] sm:$0xff]
        %v319 = vld [vmem:[%s1 + $0x18] sm:$0xff]
        %v320 = vld [vmem:[%s2] sm:$0xff]
        %v321 = vld [vmem:[%s2 + $0x8] sm:$0xff]
        %v322 = vld [vmem:[%s2 + $0x10] sm:$0xff]
        %v323 = vld [vmem:[%s2 + $0x18] sm:$0xff]
        %325 = vset.pattern.permute.xlu0 0
        %326 = vperm.xlu0 %325, %v320
        %v327 = vpop.permute.xlu0 %326
        %330 = vset.pattern.permute.xlu0 0
        %331 = vperm.xlu0 %330, %v321
        %v332 = vpop.permute.xlu0 %331
        %335 = vset.pattern.permute.xlu0 0
        %336 = vperm.xlu0 %335, %v322
        %v337 = vpop.permute.xlu0 %336
        %340 = vset.pattern.permute.xlu0 0
        %341 = vperm.xlu0 %340, %v323
        %v342 = vpop.permute.xlu0 %341
        %vm344 = vcmask 130048
        %v346 = vsel %vm344, %v316, 0
        %v349 = vsel %vm344, %v317, 0
        %v352 = vsel %vm344, %v318, 0
        %v355 = vsel %vm344, %v319, 0
        %v358 = vsel %vm344, %v300, 0
        %v361 = vsel %vm344, %v301, 0
        %v364 = vsel %vm344, %v302, 0
        %v367 = vsel %vm344, %v303, 0
        %v370 = vsel %vm344, %v304, 0
        %v373 = vsel %vm344, %v305, 0
        %v376 = vsel %vm344, %v306, 0
        %v379 = vsel %vm344, %v307, 0
        %v382 = vsel %vm344, %v308, 0
        %v385 = vsel %vm344, %v309, 0
        %v388 = vsel %vm344, %v310, 0
        %v391 = vsel %vm344, %v311, 0
        %v394 = vsel %vm344, %v312, 0
        %v397 = vsel %vm344, %v313, 0
        %v400 = vsel %vm344, %v314, 0
        %v403 = vsel %vm344, %v315, 0
        %405 = vmatprep.subr.mxu0 0.0
        %406 = vmatpush1.xpose.msra.mxu0 %v358
        %407 = vmatprep.subr.mxu0 0.0
        %408 = vmatpush1.xpose.msra.mxu0 %v361
        %409 = vmatprep.subr.mxu0 0.0
        %410 = vmatpush1.xpose.msra.mxu0 %v364
        %411 = vmatprep.subr.mxu0 0.0
        %412 = vmatpush1.xpose.msra.mxu0 %v367
        %413 = vmatprep.subr.mxu0 0.0
        %414 = vmatpush1.xpose.msra.mxu0 %v370
        %415 = vmatprep.subr.mxu0 0.0
        %416 = vmatpush1.xpose.msra.mxu0 %v373
        %417 = vmatprep.subr.mxu0 0.0
        %418 = vmatpush1.xpose.msra.mxu0 %v376
        %419 = vmatprep.subr.mxu0 0.0
        %420 = vmatpush1.xpose.msra.mxu0 %v379
        %421 = vmatprep.subr.mxu0 0.0
        %422 = vmatpush1.xpose.msra.mxu0 %v382
        %423 = vmatprep.subr.mxu0 0.0
        %424 = vmatpush1.xpose.msra.mxu0 %v385
        %425 = vmatprep.subr.mxu0 0.0
        %426 = vmatpush1.xpose.msra.mxu0 %v388
        %427 = vmatprep.subr.mxu0 0.0
        %428 = vmatpush1.xpose.msra.mxu0 %v391
        %429 = vmatprep.subr.mxu0 0.0
        %430 = vmatpush1.xpose.msra.mxu0 %v394
        %431 = vmatprep.subr.mxu0 0.0
        %432 = vmatpush1.xpose.msra.mxu0 %v397
        %433 = vmatprep.subr.mxu0 0.0
        %434 = vmatpush1.xpose.msra.mxu0 %v400
        %435 = vmatprep.subr.mxu0 0.0
        %436 = vmatpush1.xpose.msra.mxu0 %v403
        %437 = vmatprep.subr.mxu0 0.0
        %438 = vmatpush1.xpose.msra.mxu0 0.0
        %439 = vmatprep.subr.mxu0 0.0
        %440 = vmatpush1.xpose.msra.mxu0 0.0
        %441 = vmatprep.subr.mxu0 0.0
        %442 = vmatpush1.xpose.msra.mxu0 0.0
        %443 = vmatprep.subr.mxu0 0.0
        %444 = vmatpush1.xpose.msra.mxu0 0.0
        %445 = vmatprep.subr.mxu0 0.0
        %446 = vmatpush1.xpose.msra.mxu0 0.0
        %447 = vmatprep.subr.mxu0 0.0
        %448 = vmatpush1.xpose.msra.mxu0 0.0
        %449 = vmatprep.subr.mxu0 0.0
        %450 = vmatpush1.xpose.msra.mxu0 0.0
        %451 = vmatprep.subr.mxu0 0.0
        %452 = vmatpush1.xpose.msra.mxu0 0.0
        %453 = vmatprep.subr.mxu0 0.0
        %454 = vmatpush1.xpose.msra.mxu0 0.0
        %455 = vmatprep.subr.mxu0 0.0
        %456 = vmatpush1.xpose.msra.mxu0 0.0
        %457 = vmatprep.subr.mxu0 0.0
        %458 = vmatpush1.xpose.msra.mxu0 0.0
        %459 = vmatprep.subr.mxu0 0.0
        %460 = vmatpush1.xpose.msra.mxu0 0.0
        %461 = vmatprep.subr.mxu0 0.0
        %462 = vmatpush1.xpose.msra.mxu0 0.0
        %463 = vmatprep.subr.mxu0 0.0
        %464 = vmatpush1.xpose.msra.mxu0 0.0
        %465 = vmatprep.subr.mxu0 0.0
        %466 = vmatpush1.xpose.msra.mxu0 0.0
        %467 = vmatprep.subr.mxu0 0.0
        %468 = vmatpush1.xpose.msra.mxu0 0.0
        %469 = vmatprep.mubr.f32.mxu0 0.0
        %470 = vmatmul.mubr.f32.gmra.mrb[0].mxu0 %v346
        %v471 = vpop.f32.mrb[0].mxu0
        %v472 = vadd.f32 %v327, %v471
        %v473 = vpop.f32.mrb[0].mxu0
        %474 = vmatprep.mubr.f32.mxu0 0.0
        %475 = vmatmul.mubr.f32.gmra.mrb[0].mxu0 %v349
        %v476 = vpop.f32.mrb[0].mxu0
        %v477 = vadd.f32 %v332, %v476
        %v478 = vpop.f32.mrb[0].mxu0
        %479 = vmatprep.mubr.f32.mxu0 0.0
        %480 = vmatmul.mubr.f32.gmra.mrb[0].mxu0 %v352
        %v481 = vpop.f32.mrb[0].mxu0
        %v482 = vadd.f32 %v337, %v481
        %v483 = vpop.f32.mrb[0].mxu0
        %484 = vmatprep.mubr.f32.mxu0 0.0
        %485 = vmatmul.mubr.f32.gmra.mrb[0].mxu0 %v355
        %v486 = vpop.f32.mrb[0].mxu0
        %v487 = vadd.f32 %v342, %v486
        %v488 = vpop.f32.mrb[0].mxu0
        %489 = vdwg.mxu0
        %v490 = vmax.f32 %v472, 0.0
        %v491 = vmax.f32 %v477, 0.0
        %v492 = vmax.f32 %v482, 0.0
        %v493 = vmax.f32 %v487, 0.0
        %v494 = vld [vmem:[%s3] sm:$0xff]
        %v495 = vld [vmem:[%s3 + $0x8] sm:$0xff]
        %v496 = vld [vmem:[%s3 + $0x10] sm:$0xff]
        %v497 = vld [vmem:[%s3 + $0x18] sm:$0xff]
        %v498 = vld [vmem:[%s4] sm:$0xff]
        %v499 = vld [vmem:[%s4 + $0x8] sm:$0xff]
        %v500 = vld [vmem:[%s4 + $0x10] sm:$0xff]
        %v501 = vld [vmem:[%s4 + $0x18] sm:$0xff]
        %503 = vset.pattern.permute.xlu0 0
        %504 = vperm.xlu0 %503, %v498
        %v505 = vpop.permute.xlu0 %504
        %508 = vset.pattern.permute.xlu0 0
        %509 = vperm.xlu0 %508, %v499
        %v510 = vpop.permute.xlu0 %509
        %513 = vset.pattern.permute.xlu0 0
        %514 = vperm.xlu0 %513, %v500
        %v515 = vpop.permute.xlu0 %514
        %518 = vset.pattern.permute.xlu0 0
        %519 = vperm.xlu0 %518, %v501
        %v520 = vpop.permute.xlu0 %519
        %vm522 = vcmask 261120
        %v524 = vsel %vm522, %v494, 0
        %v527 = vsel %vm522, %v495, 0
        %v530 = vsel %vm522, %v496, 0
        %v533 = vsel %vm522, %v497, 0
        %535 = vmatprep.subr.mxu0 0.0
        %536 = vmatpush1.msra.mxu0 %v490
        %537 = vmatprep.subr.mxu0 0.0
        %538 = vmatpush1.msra.mxu0 %v491
        %539 = vmatprep.subr.mxu0 0.0
        %540 = vmatpush1.msra.mxu0 %v492
        %541 = vmatprep.subr.mxu0 0.0
        %542 = vmatpush1.msra.mxu0 %v493
        %543 = vmatprep.subr.mxu0 0.0
        %544 = vmatpush1.msra.mxu0 0.0
        %545 = vmatprep.subr.mxu0 0.0
        %546 = vmatpush1.msra.mxu0 0.0
        %547 = vmatprep.subr.mxu0 0.0
        %548 = vmatpush1.msra.mxu0 0.0
        %549 = vmatprep.subr.mxu0 0.0
        %550 = vmatpush1.msra.mxu0 0.0
        %551 = vmatprep.subr.mxu0 0.0
        %552 = vmatpush1.msra.mxu0 0.0
        %553 = vmatprep.subr.mxu0 0.0
        %554 = vmatpush1.msra.mxu0 0.0
        %555 = vmatprep.subr.mxu0 0.0
        %556 = vmatpush1.msra.mxu0 0.0
        %557 = vmatprep.subr.mxu0 0.0
        %558 = vmatpush1.msra.mxu0 0.0
        %559 = vmatprep.subr.mxu0 0.0
        %560 = vmatpush1.msra.mxu0 0.0
        %561 = vmatprep.subr.mxu0 0.0
        %562 = vmatpush1.msra.mxu0 0.0
        %563 = vmatprep.subr.mxu0 0.0
        %564 = vmatpush1.msra.mxu0 0.0
        %565 = vmatprep.subr.mxu0 0.0
        %566 = vmatpush1.msra.mxu0 0.0
        %567 = vmatprep.subr.mxu0 0.0
        %568 = vmatpush1.msra.mxu0 0.0
        %569 = vmatprep.subr.mxu0 0.0
        %570 = vmatpush1.msra.mxu0 0.0
        %571 = vmatprep.subr.mxu0 0.0
        %572 = vmatpush1.msra.mxu0 0.0
        %573 = vmatprep.subr.mxu0 0.0
        %574 = vmatpush1.msra.mxu0 0.0
        %575 = vmatprep.subr.mxu0 0.0
        %576 = vmatpush1.msra.mxu0 0.0
        %577 = vmatprep.subr.mxu0 0.0
        %578 = vmatpush1.msra.mxu0 0.0
        %579 = vmatprep.subr.mxu0 0.0
        %580 = vmatpush1.msra.mxu0 0.0
        %581 = vmatprep.subr.mxu0 0.0
        %582 = vmatpush1.msra.mxu0 0.0
        %583 = vmatprep.subr.mxu0 0.0
        %584 = vmatpush1.msra.mxu0 0.0
        %585 = vmatprep.subr.mxu0 0.0
        %586 = vmatpush1.msra.mxu0 0.0
        %587 = vmatprep.subr.mxu0 0.0
        %588 = vmatpush1.msra.mxu0 0.0
        %589 = vmatprep.subr.mxu0 0.0
        %590 = vmatpush1.msra.mxu0 0.0
        %591 = vmatprep.subr.mxu0 0.0
        %592 = vmatpush1.msra.mxu0 0.0
        %593 = vmatprep.subr.mxu0 0.0
        %594 = vmatpush1.msra.mxu0 0.0
        %595 = vmatprep.subr.mxu0 0.0
        %596 = vmatpush1.msra.mxu0 0.0
        %597 = vmatprep.subr.mxu0 0.0
        %598 = vmatpush1.msra.mxu0 0.0
        %599 = vmatprep.mubr.f32.mxu0 0.0
        %600 = vmatmul.mubr.f32.gmra.mrb[0].mxu0 %v524
        %v601 = vpop.f32.mrb[0].mxu0
        %v602 = vadd.f32 %v505, %v601
        %v603 = vpop.f32.mrb[0].mxu0
        %604 = vmatprep.mubr.f32.mxu0 0.0
        %605 = vmatmul.mubr.f32.gmra.mrb[0].mxu0 %v527
        %v606 = vpop.f32.mrb[0].mxu0
        %v607 = vadd.f32 %v510, %v606
        %v608 = vpop.f32.mrb[0].mxu0
        %609 = vmatprep.mubr.f32.mxu0 0.0
        %610 = vmatmul.mubr.f32.gmra.mrb[0].mxu0 %v530
        %v611 = vpop.f32.mrb[0].mxu0
        %v612 = vadd.f32 %v515, %v611
        %v613 = vpop.f32.mrb[0].mxu0
        %614 = vmatprep.mubr.f32.mxu0 0.0
        %615 = vmatmul.mubr.f32.gmra.mrb[0].mxu0 %v533
        %v616 = vpop.f32.mrb[0].mxu0
        %v617 = vadd.f32 %v520, %v616
        %v618 = vpop.f32.mrb[0].mxu0
        %619 = vdwg.mxu0
        %v620 = vmax.f32 %v602, 0.0
        %v621 = vmax.f32 %v607, 0.0
        %v622 = vmax.f32 %v612, 0.0
        %v623 = vmax.f32 %v617, 0.0
        %v624 = vld [vmem:[%s5] sm:$0xff]
        %v625 = vld [vmem:[%s5 + $0x8] sm:$0xff]
        %v626 = vld [vmem:[%s5 + $0x10] sm:$0xff]
        %v627 = vld [vmem:[%s5 + $0x18] sm:$0xff]
        %v628 = vld [vmem:[#allocation2] sm:$0x1]
        %630 = vset.pattern.permute.xlu0 0
        %631 = vperm.xlu0 %630, %v624
        %v632 = vpop.permute.xlu0 %631
        %635 = vset.pattern.permute.xlu0 0
        %636 = vperm.xlu0 %635, %v625
        %v637 = vpop.permute.xlu0 %636
        %640 = vset.pattern.permute.xlu0 0
        %641 = vperm.xlu0 %640, %v626
        %v642 = vpop.permute.xlu0 %641
        %645 = vset.pattern.permute.xlu0 0
        %646 = vperm.xlu0 %645, %v627
        %v647 = vpop.permute.xlu0 %646
        %v649 = vmul.f32 %v620, %v632
        %v650 = vmul.f32 %v621, %v637
        %v651 = vmul.f32 %v622, %v642
        %v652 = vmul.f32 %v623, %v647
        %v653 = vadd.f32 %v649, %v650
        %v654 = vadd.f32 %v653, %v651
        %v655 = vadd.f32 %v654, %v652
        %v656 = vrot.slane %v655, 4
        %v657 = vadd.f32 %v655, %v656
        %v658 = vrot.slane %v657, 2
        %v659 = vadd.f32 %v657, %v658
        %v660 = vrot.slane %v659, 1
        %v661 = vadd.f32 %v659, %v660
        %663 = vset.pattern.permute.xlu0 0
        %664 = vperm.xlu0 %663, %v628
        %v665 = vpop.permute.xlu0 %664
        %v667 = vlaneseq
        %v668 = vshrl.u32 %v667, 7
        %v669 = vsub.s32 0, %v668
        %v670 = vrot.slane %v665, %v669
        %v671 = vadd.f32 %v661, %v670
        %v672 = vsub.f32 0.0, %v671
        %v673 = vmul.f32 %v672, 1.442695
        %v674 = vpow.pop %v673
        %v675 = vadd.f32 %v674, 1.0
        %v676 = vrcp.pop %v675
        %v677 = vmul.f32 1.0, %v676
        %678 = vst [vmem:[%s285] sm:$0x1] %v677
        %s679 = sand.u32 %s183, 1
        %s680 = scalar_lea.sflag [#allocation4], %s679
        %s681 = sand.u32 %s183, 1
        %s682 = scalar_lea.vmem [#allocation3], %s681
        // Predicated region
        $region49: #{tpu_custom_call.1} parent=47 // pred_check
          %p683 = pneg %p193
        $region50: #{tpu_custom_call.1} parent=47 // pred_check_branch
          %685 = sbr.rel (%p683) target = $region52
        $region51: #{tpu_custom_call.1} parent=47 // pred_region
          %s687 = ssub.s32 16, 16
          %688 = vsyncadd %s680, %s687
          %s689 = smul.addr %s23, 16
          %s690 = scalar_lea.hbm %s7, %s689
          %s692 = sshll.u32 %s682, 4
          %s693 = int_to_ptr.vmem [resolvable:$true] %s692
          %695 = dma.vmem_to_hbm [thread:$0]  %s693, 16, %s690, %s680
        $region52: #{tpu_custom_call.1} parent=47 // pred_fallthru
          _
      $region48: #{tpu_custom_call.1} parent=5 // pred_fallthru
        _
      %p696 = scmp.le.s32.totalorder 2, %s18
      // Predicated region
      $region53: #{tpu_custom_call.1} parent=5 // pred_check
        %p697 = pneg %p696
      $region54: #{tpu_custom_call.1} parent=5 // pred_check_branch
        %699 = sbr.rel (%p697) target = $region56
      $region55: #{tpu_custom_call.1} parent=5 // pred_region
        %s700 = ssub.s32 %s18, 2
        // Predicated region
        $region57: #{tpu_custom_call.1} parent=55 // pred_check
          %p701 = pneg %p199
        $region58: #{tpu_custom_call.1} parent=55 // pred_check_branch
          %703 = sbr.rel (%p701) target = $region60
        $region59: #{tpu_custom_call.1} parent=55 // pred_region
          %s704 = sand.u32 %s184, 1
          %s705 = scalar_lea.sflag [#allocation4], %s704
          %s706 = sand.u32 %s184, 1
          %s707 = scalar_lea.vmem [#allocation3], %s706
          %708 = dma.done %s705, 16
        $region60: #{tpu_custom_call.1} parent=55 // pred_fallthru
          _
      $region56: #{tpu_custom_call.1} parent=5 // pred_fallthru
        _
    $region6: #{tpu_custom_call.1} parent=1 // loop_footer
      %s22 = sadd.s32 1, %s18
    $region7: #{tpu_custom_call.1} parent=1 // loop_footer_branch
      %17 = sbr.rel target = $region3
    $region8: #{tpu_custom_call.1} parent=1 // loop_exit
      _
    %709 = vsyncpa [#allocation4], 1
    %s710 = scalar_lea.sflag [#allocation4], 1
    %711 = vsyncpa %s710, 1

</llo_original>
